<compile_context>
chip_gen: v6e
topology: v6e:2x2x1
jax: 0.10.0
libtpu: 0.0.40
codegen_flags: <defaults>
</compile_context>

<pallas_src>
import math
import warnings

import jax
import jax.numpy as jnp
from jax.experimental import pallas as pl
from jax.experimental.pallas import tpu as pltpu

_LANE = 128
_MIB = 1024 * 1024


def _ceil_to(v: int, m: int) -> int:
    return -(-v // m) * m


def _sublane_pack(dtype) -> int:
    # (8,128) vreg tiles for 32-bit, (16,128) for 16-bit, (32,128) for 8-bit.
    return max(8, 32 // jnp.dtype(dtype).itemsize)


def _default_step_budget_bytes() -> int:
    """Double-buffered per-grid-step VMEM budget: ~1/4 of physical VMEM.

    v5e/v6e (128 MiB physical) -> 32 MiB/step; v7x (64 MiB per TC) -> 16 MiB/step.
    """
    try:
        cap = int(pltpu.get_tpu_info().vmem_capacity_bytes)
    except Exception:
        cap = 64 * _MIB  # conservative (v7x-sized) fallback
    return max(4 * _MIB, cap // 4)


def build_pe_table(d_model: int, max_len: int = 5000, dtype=jnp.float32) -> jnp.ndarray:
    """Sinusoidal table, shape (1, max_len_padded, d_model), built once in `dtype`.

    max_len is rounded up so max_len * d_model is a multiple of 128; the hot
    path can then bitcast-view the table as (1, rows, 128) with no per-call
    slice / cast / copy.  forward() only reads the first S rows, so the extra
    rows are inert.
    """
    assert d_model % 4 == 0, f"d_model must be divisible by 4, got {d_model}"
    g = _LANE // math.gcd(d_model, _LANE)
    max_len_p = _ceil_to(max_len, g)
    position = jnp.arange(max_len_p, dtype=jnp.float32)[:, None]            # (L, 1)
    div_term = jnp.exp(jnp.arange(0, d_model, 2, dtype=jnp.float32)
                       * (-math.log(10000.0) / d_model))                    # (D/2,)
    angles = position * div_term                                            # (L, D/2)
    # Interleave: even dims sin, odd dims cos (matches pe[:,0::2] / pe[:,1::2]).
    pe = jnp.stack([jnp.sin(angles), jnp.cos(angles)], axis=-1)
    pe = pe.reshape(max_len_p, d_model)
    # Angles computed in f32 for precision at large positions; single cast here.
    return pe.astype(dtype)[None, :, :]                                     # (1, L, D)


def _add_pe_kernel(x_ref, pe_ref, o_ref):
    # x_ref: (B, t, lanes), pe_ref: (1, t, lanes).  Broadcasting the size-1
    # *major* axis reuses each pe vreg across the batch (no sublane shuffling).
    # NOTE: for a partial (masked) last block the OOB slice of x_ref holds
    # garbage; that is fine because the matching OOB output store is masked.
    o_ref[...] = x_ref[...] + pe_ref[...]


def _choose_rows_tile(R: int, B: int, itemsize: int, pack: int, budget: int) -> int:
    """Pick the (rows, 128)-block row count for the lane-dense path.

    - rows is a multiple of the sublane pack (8/16/32): fully dense vregs,
      padding-free VMEM blocks.
    - padding-exact double-buffered footprint (x + out + pe) stays in `budget`.
    - prefers an exact divisor of R (no masked partial last block).
    - prefers an even number of grid steps (v7x megacore: both TCs get work).
    """
    if R <= pack:
        return R  # single full-extent block; nothing to tile
    per_row = 2 * (2 * B + 1) * _LANE * itemsize        # double-buffered bytes / row
    max_rows = max(pack, (budget // per_row) // pack * pack)
    # Keep at least two grid steps so a v7x megacore can split the work.
    max_rows = min(max_rows, _ceil_to(_ceil_to(R, 2) // 2, pack))
    lo = max(pack, (max_rows // 2) // pack * pack)

    def quality(rows):
        n = pl.cdiv(R, rows)
        return (2 * int(R % rows == 0) + int(n % 2 == 0), rows)

    return max(range(lo, max_rows + 1, pack), key=quality)


def _pos_enc_lane_dense(x, pe_table, budget):
    B, S, D = x.shape
    itemsize = jnp.dtype(x.dtype).itemsize
    pack = _sublane_pack(x.dtype)
    total = S * D
    R = total // _LANE

    x3 = x.reshape(B, R, _LANE)                 # bitcast view (contiguous)
    pe3 = pe_table.reshape(1, -1, _LANE)        # bitcast view (table is 128-aligned)

    rows = _choose_rows_tile(R, B, itemsize, pack, budget)
    num_tiles = pl.cdiv(R, rows)
    if rows % pack != 0:
        # Tiny full-extent case (rows == R < pack): slice pe so its block is
        # also full-extent (keeps the (8,128) block-shape rule satisfied).
        # Bounded to S*D elements -> negligible.
        pe3 = pe3[:, :R, :]

    rows_pad = _ceil_to(rows, pack)
    # Padding-exact double-buffered footprint: 2 buffers x (x + out + pe) blocks.
    step_bytes = 2 * (2 * B + 1) * rows_pad * _LANE * itemsize
    vmem_limit = min(64 * _MIB, max(4 * _MIB, int(step_bytes * 1.3)))

    out3 = pl.pallas_call(
        _add_pe_kernel,
        out_shape=jax.ShapeDtypeStruct((B, R, _LANE), x.dtype),
        grid_spec=pltpu.PrefetchScalarGridSpec(
            num_scalar_prefetch=0,
            grid=(num_tiles,),
            in_specs=[pl.BlockSpec((B, rows, _LANE), lambda t: (0, t, 0)),
                      pl.BlockSpec((1, rows, _LANE), lambda t: (0, t, 0))],
            out_specs=pl.BlockSpec((B, rows, _LANE), lambda t: (0, t, 0))),
        compiler_params=pltpu.CompilerParams(
            dimension_semantics=("parallel",),
            vmem_limit_bytes=vmem_limit),
        input_output_aliases={0: 0},
        cost_estimate=pl.CostEstimate(
            flops=B * total, transcendentals=0,
            bytes_accessed=(2 * B + 1) * total * itemsize),
    )(x3, pe3)
    return out3.reshape(B, S, D)


def _pos_enc_rowwise(x, pe_table, budget):
    # Fallback when S*D is not 128-aligned: tile the sequence axis directly.
    # Lane density is whatever D provides (masked vst if D < 128) -- correct,
    # and only used for odd shapes.
    B, S, D = x.shape
    itemsize = jnp.dtype(x.dtype).itemsize
    pack = _sublane_pack(x.dtype)
    pe_used = pe_table[:, :S, :]          # bounded per-call slice (S rows only)

    d_pad = _ceil_to(D, _LANE)
    per_row = 2 * (2 * B + 1) * d_pad * itemsize        # double-buffered / seq row
    max_rows = max(pack, (budget // per_row) // pack * pack)
    s_tile = S if S <= max_rows else max_rows
    num_tiles = pl.cdiv(S, s_tile)
    step_bytes = 2 * (2 * B + 1) * _ceil_to(s_tile, pack) * d_pad * itemsize
    vmem_limit = min(64 * _MIB, max(4 * _MIB, int(step_bytes * 1.3)))

    return pl.pallas_call(
        _add_pe_kernel,
        out_shape=jax.ShapeDtypeStruct((B, S, D), x.dtype),
        grid_spec=pltpu.PrefetchScalarGridSpec(
            num_scalar_prefetch=0,
            grid=(num_tiles,),
            in_specs=[pl.BlockSpec((B, s_tile, D), lambda t: (0, t, 0)),
                      pl.BlockSpec((1, s_tile, D), lambda t: (0, t, 0))],
            out_specs=pl.BlockSpec((B, s_tile, D), lambda t: (0, t, 0))),
        compiler_params=pltpu.CompilerParams(
            dimension_semantics=("parallel",),
            vmem_limit_bytes=vmem_limit),
        input_output_aliases={0: 0},
        cost_estimate=pl.CostEstimate(
            flops=B * S * D, transcendentals=0,
            bytes_accessed=(2 * B + 1) * S * D * itemsize),
    )(x, pe_used)


def positional_encoding(x: jnp.ndarray, pe_table: jnp.ndarray, *,
                        vmem_step_budget_bytes: int | None = None) -> jnp.ndarray:
    """forward(x) = x + pe[:, :x.shape[1], :].

    x: (B, S, D); pe_table: output of build_pe_table (same dtype as x).
    For the in-place HBM writeback (input_output_aliases={0:0}) to actually
    take effect, call this under jax.jit with donate_argnums for x.
    """
    B, S, D = x.shape
    _, max_len_p, d_pe = pe_table.shape
    if d_pe != D:
        raise ValueError(f"d_model mismatch: x has {D}, pe table has {d_pe}")
    if S > max_len_p:
        raise ValueError(f"sequence length {S} exceeds pe table max_len {max_len_p}")
    if pe_table.dtype != x.dtype:
        # Build the table in the compute dtype (build_pe_table(dtype=...)) --
        # a per-call cast of the whole table is an extra HBM round trip.
        raise ValueError(f"dtype mismatch: x is {x.dtype}, pe table is {pe_table.dtype}")

    budget = (vmem_step_budget_bytes if vmem_step_budget_bytes is not None
              else _default_step_budget_bytes())

    if (S * D) % _LANE == 0 and (max_len_p * D) % _LANE == 0:
        return _pos_enc_lane_dense(x, pe_table, budget)
    return _pos_enc_rowwise(x, pe_table, budget)


if __name__ == "__main__":
    # If XLA cannot use the donation it only warns; keep the run output clean.
    warnings.filterwarnings("ignore", message=".*[Dd]onat.*")

    # Shapes consistent with the module: batch=2, seq=8, d_model=32.
    B, S, D = 2, 8, 32
    x = jax.random.normal(jax.random.PRNGKey(0), (B, S, D), dtype=jnp.float32)
    pe_table = build_pe_table(D, max_len=5000, dtype=x.dtype)   # built once

    ref = x + pe_table[:, :S, :]                 # reference BEFORE donating x

    fwd = jax.jit(positional_encoding, donate_argnums=(0,))     # donation -> alias is real
    out = jax.block_until_ready(fwd(x, pe_table))
    assert out.shape == (B, S, D)
    assert jnp.allclose(out, ref, atol=1e-6, rtol=1e-6)

    # Multi-tile lane-dense path: force 4 dense (8,128) row-tiles with a tiny
    # per-step budget; (2, 64, 64) -> 32 rows of 128 lanes, no masked epilogue.
    B2, S2, D2 = 2, 64, 64
    x2 = jax.random.normal(jax.random.PRNGKey(1), (B2, S2, D2), dtype=jnp.float32)
    pe2 = build_pe_table(D2, max_len=5000, dtype=x2.dtype)
    out2 = jax.block_until_ready(
        positional_encoding(x2, pe2,
                            vmem_step_budget_bytes=2 * (2 * B2 + 1) * 8 * _LANE * 4))
    assert jnp.allclose(out2, x2 + pe2[:, :S2, :], atol=1e-6, rtol=1e-6)

    # Row-wise fallback path (S*D not a multiple of 128).
    B3, S3, D3 = 2, 7, 36
    x3 = jax.random.normal(jax.random.PRNGKey(2), (B3, S3, D3), dtype=jnp.float32)
    pe3 = build_pe_table(D3, max_len=64, dtype=x3.dtype)
    out3 = jax.block_until_ready(positional_encoding(x3, pe3))
    assert jnp.allclose(out3, x3 + pe3[:, :S3, :], atol=1e-6, rtol=1e-6)

    print("KERNEL_OK")
</pallas_src>

<mosaic_0001>
module attributes {stable_mosaic.version = 11 : i64} {
  func.func @_add_pe_kernel(%arg0: i32, %arg1: memref<2x2x128xf32, #tpu.memory_space<vmem>>, %arg2: memref<1x2x128xf32, #tpu.memory_space<vmem>>, %arg3: memref<2x2x128xf32, #tpu.memory_space<vmem>>) attributes {dimension_semantics = [#tpu.dimension_semantics<parallel>], iteration_bounds = array<i64: 1>, scalar_prefetch = 0 : i64, scratch_operands = 0 : i64, tpu.core_type = #tpu.core_type<tc>, window_params = [{transform_indices = @transform_0, window_bounds = array<i64: 2, 2, 128>}, {transform_indices = @transform_1, window_bounds = array<i64: 1, 2, 128>}, {transform_indices = @transform_2, window_bounds = array<i64: 2, 2, 128>}]} {
    %c0 = arith.constant 0 : index
    %c0_0 = arith.constant 0 : index
    %c0_1 = arith.constant 0 : index
    %0 = vector.load %arg1[%c0, %c0_0, %c0_1] : memref<2x2x128xf32, #tpu.memory_space<vmem>>, vector<2x2x128xf32>
    %c0_2 = arith.constant 0 : index
    %c0_3 = arith.constant 0 : index
    %c0_4 = arith.constant 0 : index
    %1 = vector.load %arg2[%c0_2, %c0_3, %c0_4] : memref<1x2x128xf32, #tpu.memory_space<vmem>>, vector<1x2x128xf32>
    %2 = vector.broadcast %1 : vector<1x2x128xf32> to vector<2x2x128xf32>
    %3 = arith.addf %0, %2 : vector<2x2x128xf32>
    %c0_5 = arith.constant 0 : index
    %c0_6 = arith.constant 0 : index
    %c0_7 = arith.constant 0 : index
    %4 = vector.load %arg3[%c0_5, %c0_6, %c0_7] : memref<2x2x128xf32, #tpu.memory_space<vmem>>, vector<2x2x128xf32>
    tpu.vector_store %arg3[%c0_5, %c0_6, %c0_7], %3 {strides = array<i32>} : memref<2x2x128xf32, #tpu.memory_space<vmem>>, vector<2x2x128xf32>,
    return
  }
  func.func @transform_0(%arg0: i32) -> (i32, i32, i32) {
    %c0_i32 = arith.constant 0 : i32
    %c0_i32_0 = arith.constant 0 : i32
    %c0_i32_1 = arith.constant 0 : i32
    return %c0_i32, %arg0, %c0_i32_0 : i32, i32, i32
  }
  func.func @transform_1(%arg0: i32) -> (i32, i32, i32) {
    %c0_i32 = arith.constant 0 : i32
    %c0_i32_0 = arith.constant 0 : i32
    %c0_i32_1 = arith.constant 0 : i32
    return %c0_i32, %arg0, %c0_i32_0 : i32, i32, i32
  }
  func.func @transform_2(%arg0: i32) -> (i32, i32, i32) {
    %c0_i32 = arith.constant 0 : i32
    %c0_i32_0 = arith.constant 0 : i32
    %c0_i32_1 = arith.constant 0 : i32
    return %c0_i32, %arg0, %c0_i32_0 : i32, i32, i32
  }
}

</mosaic_0001>

<llo_original>
// kernel: positional_encoding.1
$region0: #{positional_encoding.1}
  #allocation0 [shape = 'u32[]', space=smem, size = 0x4, offset = 0x4, fixed_abs, tag = 'smem constant byte address 0x4 - core index']
  #allocation1 [shape = 'u32[144,128]{1,0:T(1,128)}', space=vmem, size = 0x12000, scoped, tag = 'internal scratch']
  %s0 = inlined_call_operand.vmem [shape: f32[2,2,128], index: 0, kind: input, shape index: {}, may-alias: {0,2}]
  %s1 = inlined_call_operand.vmem [shape: f32[1,2,128], index: 1, kind: input, shape index: {}]
  %s2 = inlined_call_operand.vmem [shape: f32[2,2,128], index: 2, kind: output, shape index: {}, may-alias: {0,2}]
  %s3 = sld [smem:[#allocation0]]
  $region18: #{positional_encoding.1} parent=0
    _
  %s5 = ssub.s32 1, %s3
  %s6 = scalar_select 0, %s5, %s3
  // Predicated region
  $region2: #{positional_encoding.1} parent=0 // pred_check
    _
  $region3: #{positional_encoding.1} parent=0 // pred_check_branch
    %8 = sbr.rel (0) target = $region5
  $region4: #{positional_encoding.1} parent=0 // pred_region
    _
  $region5: #{positional_encoding.1} parent=0 // pred_fallthru
    _
  // Predicated region
  $region6: #{positional_encoding.1} parent=0 // pred_check
    _
  $region7: #{positional_encoding.1} parent=0 // pred_check_branch
    %10 = sbr.rel (0) target = $region9
  $region8: #{positional_encoding.1} parent=0 // pred_region
    _
  $region9: #{positional_encoding.1} parent=0 // pred_fallthru
    _
  %v11 = vld [vmem:[%s0] sm:$0x3]
  %v12 = vld [vmem:[%s0 + $0x2] sm:$0x3]
  %v13 = vld [vmem:[%s1] sm:$0x3]
  %v14 = vadd.f32 %v11, %v13
  %v15 = vadd.f32 %v12, %v13
  %16 = vst [vmem:[%s2] sm:$0x3] %v14
  %17 = vst [vmem:[%s2 + $0x2] sm:$0x3] %v15
  // Predicated region
  $region10: #{positional_encoding.1} parent=0 // pred_check
    _
  $region11: #{positional_encoding.1} parent=0 // pred_check_branch
    %19 = sbr.rel (0) target = $region13
  $region12: #{positional_encoding.1} parent=0 // pred_region
    _
  $region13: #{positional_encoding.1} parent=0 // pred_fallthru
    _
  // Predicated region
  $region14: #{positional_encoding.1} parent=0 // pred_check
    _
  $region15: #{positional_encoding.1} parent=0 // pred_check_branch
    %21 = sbr.rel (0) target = $region17
  $region16: #{positional_encoding.1} parent=0 // pred_region
    _
  $region17: #{positional_encoding.1} parent=0 // pred_fallthru
    _

</llo_original>
